<compile_context>
chip_gen: v6e
topology: v6e:2x2x1
jax: 0.10.0
libtpu: 0.0.40
codegen_flags: <defaults>
</compile_context>

<pallas_src>
import functools

import numpy as np
import jax
import jax.numpy as jnp
from jax.experimental import pallas as pl
from jax.experimental.pallas import tpu as pltpu


def _round_up(x, m):
    return ((x + m - 1) // m) * m


def _largest_divisor_tile(full, unit, cap):
    """Largest multiple of `unit` that divides `full` and is <= cap (`full` % `unit` == 0)."""
    cap = max(unit, min(cap, full))
    t = (cap // unit) * unit
    while t > unit:
        if full % t == 0:
            return t
        t -= unit
    return unit


def _moving_avg_kernel(a_ref, x_ref, o_ref, *, inv_k):
    # a_ref: (lo_tile, L)     integer-count banded matrix rows (one L_out tile)
    # x_ref: (L, n_tile)      lane-dense slab (lanes carry folded B*C, padded to 128)
    # o_ref: (lo_tile, n_tile)
    acc = jnp.dot(a_ref[...], x_ref[...], preferred_element_type=jnp.float32)
    o_ref[...] = (acc * inv_k).astype(o_ref.dtype)


def moving_avg(x, kernel_size, stride):
    """x: (B, L, C) -> (B, L_out, C), matching the PyTorch moving_avg module."""
    B, L, C = x.shape
    pad = (kernel_size - 1) // 2
    L_padded = L + 2 * pad
    L_out = (L_padded - kernel_size) // stride + 1

    dtype = x.dtype
    itemsize = jnp.dtype(dtype).itemsize
    su = max(8, 32 // itemsize)          # sublane packing unit: 8 f32, 16 bf16, 32 int8/fp8

    # ---- banded averaging matrix with exact integer counts ---------------------------
    # Replicate padding folds into clamped column indices (edge columns get counts 2, 3, ...);
    # stride is encoded by the per-row window offsets.
    win = np.arange(L_out)[:, None] * stride + np.arange(kernel_size)[None, :] - pad
    win = np.clip(win, 0, L - 1)                                        # (L_out, kernel_size)
    a = np.zeros((L_out, L), dtype=np.float32)
    np.add.at(a, (np.repeat(np.arange(L_out), kernel_size), win.ravel()), 1.0)

    Lo_pad = _round_up(L_out, su)
    N = B * C
    N_pad = _round_up(N, 128)

    if Lo_pad > L_out:
        a = np.concatenate([a, np.zeros((Lo_pad - L_out, L), np.float32)], axis=0)
    a = jnp.asarray(a, dtype=dtype)      # small integer counts are exact even in bf16

    # ---- fold (B, C) into one lane-dense axis so stores are never masked --------------
    x2d = jnp.transpose(x, (1, 0, 2)).reshape(L, N)
    if N_pad > N:
        x2d = jnp.pad(x2d, ((0, 0), (0, N_pad - N)))

    # ---- tile selection driven by the actual device VMEM ------------------------------
    try:
        vmem_cap = int(pltpu.get_tpu_info().vmem_capacity_bytes)
    except Exception:
        vmem_cap = 64 * 1024 * 1024      # conservative fallback (v7x per-core)
    budget = int(vmem_cap * 0.7)

    n_tile = _largest_divisor_tile(N_pad, 128, 1024)
    lo_tile = Lo_pad                      # whole L_out in one matmul when it fits

    def est(lo_t, n_t):
        # double-buffered A tile + x slab + out tile, plus f32 accumulator headroom
        return 2 * (lo_t * L + L * n_t + lo_t * n_t) * itemsize + 2 * lo_t * n_t * 4

    while est(lo_tile, n_tile) > budget and n_tile > 128:
        n_tile = _largest_divisor_tile(N_pad, 128, n_tile // 2)
    while est(lo_tile, n_tile) > budget and lo_tile > su:
        lo_tile = _largest_divisor_tile(Lo_pad, su, lo_tile // 2)

    # v7x has 2 TensorCores: make sure a "parallel" axis has >= 2 steps when possible.
    if (N_pad // n_tile) * (Lo_pad // lo_tile) == 1:
        if N_pad >= 256:
            n_tile = _largest_divisor_tile(N_pad, 128, N_pad // 2)
        elif Lo_pad >= 2 * su:
            lo_tile = _largest_divisor_tile(Lo_pad, su, Lo_pad // 2)

    n_grid = N_pad // n_tile
    lo_grid = Lo_pad // lo_tile

    kernel = functools.partial(_moving_avg_kernel, inv_k=float(1.0 / kernel_size))

    out2d = pl.pallas_call(
        kernel,
        out_shape=jax.ShapeDtypeStruct((Lo_pad, N_pad), dtype),
        grid_spec=pltpu.PrefetchScalarGridSpec(
            num_scalar_prefetch=0,
            grid=(n_grid, lo_grid),
            in_specs=[
                # A tile: row-slice expressed in the BlockSpec (no in-kernel slicing);
                # independent of the outer lane axis.
                pl.BlockSpec((lo_tile, L), lambda n, t: (t, 0)),
                # x slab: independent of the inner L_out-tile axis -> read from HBM
                # exactly once per lane slab, resident across all L_out tiles.
                pl.BlockSpec((L, n_tile), lambda n, t: (0, n)),
            ],
            out_specs=pl.BlockSpec((lo_tile, n_tile), lambda n, t: (t, n)),
        ),
        compiler_params=pltpu.CompilerParams(
            dimension_semantics=("parallel", "parallel"),
            vmem_limit_bytes=int(min(vmem_cap,
                                     max(32 * 1024 * 1024, 2 * est(lo_tile, n_tile)))),
        ),
    )(a, x2d)

    # TODO(synk): for very long sequences a band-windowed K (instead of dense K=L) would
    # cut redundant MXU FLOPs further; dense A is kept here for simplicity/clarity.
    out = out2d[:L_out, :N].reshape(L_out, B, C)
    return jnp.transpose(out, (1, 0, 2))


def _reference_moving_avg(x, kernel_size, stride):
    # Pure-JAX reference mirroring the PyTorch code exactly.
    pad = (kernel_size - 1) // 2
    front = jnp.repeat(x[:, 0:1, :], pad, axis=1)
    end = jnp.repeat(x[:, -1:, :], pad, axis=1)
    xp = jnp.concatenate([front, x, end], axis=1)               # (B, L_pad, C)
    L_pad = xp.shape[1]
    L_out = (L_pad - kernel_size) // stride + 1
    cols = []
    for t in range(L_out):
        cols.append(jnp.mean(xp[:, t * stride:t * stride + kernel_size, :], axis=1))
    return jnp.stack(cols, axis=1)


if __name__ == "__main__":
    key = jax.random.PRNGKey(0)
    B, L, C = 2, 16, 32
    x = jax.random.normal(key, (B, L, C), dtype=jnp.float32)

    # Common DLinear config: odd kernel, stride 1.
    out = jax.block_until_ready(moving_avg(x, kernel_size=5, stride=1))
    ref = _reference_moving_avg(x, 5, 1)
    assert out.shape == ref.shape, (out.shape, ref.shape)
    assert jnp.allclose(out, ref, atol=1e-5, rtol=1e-5), "mismatch vs reference (k=5,s=1)"

    # Even kernel + stride > 1: exercises stride/padding folded into the banded matrix.
    out2 = jax.block_until_ready(moving_avg(x, kernel_size=4, stride=2))
    ref2 = _reference_moving_avg(x, 4, 2)
    assert out2.shape == ref2.shape, (out2.shape, ref2.shape)
    assert jnp.allclose(out2, ref2, atol=1e-5, rtol=1e-5), "mismatch vs reference (k=4,s=2)"

    print("KERNEL_OK")
</pallas_src>

<mosaic_0001>
module attributes {stable_mosaic.version = 11 : i64} {
  func.func @_moving_avg_kernel(%arg0: i32, %arg1: i32, %arg2: memref<8x16xf32, #tpu.memory_space<vmem>>, %arg3: memref<16x128xf32, #tpu.memory_space<vmem>>, %arg4: memref<8x128xf32, #tpu.memory_space<vmem>>) attributes {dimension_semantics = [#tpu.dimension_semantics<parallel>, #tpu.dimension_semantics<parallel>], iteration_bounds = array<i64: 1, 2>, scalar_prefetch = 0 : i64, scratch_operands = 0 : i64, tpu.core_type = #tpu.core_type<tc>, window_params = [{transform_indices = @transform_0, window_bounds = array<i64: 8, 16>}, {transform_indices = @transform_1, window_bounds = array<i64: 16, 128>}, {transform_indices = @transform_2, window_bounds = array<i64: 8, 128>}]} {
    %c0 = arith.constant 0 : index
    %c0_0 = arith.constant 0 : index
    %0 = vector.load %arg2[%c0, %c0_0] : memref<8x16xf32, #tpu.memory_space<vmem>>, vector<8x16xf32>
    %c0_1 = arith.constant 0 : index
    %c0_2 = arith.constant 0 : index
    %1 = vector.load %arg3[%c0_1, %c0_2] : memref<16x128xf32, #tpu.memory_space<vmem>>, vector<16x128xf32>
    %cst = arith.constant dense<0.000000e+00> : vector<8x128xf32>
    %2 = tpu.matmul %0, %1, %cst {dimension_numbers = #tpu.dot_dimension_numbers<[1], [0], [0], [1], [0, 0, 1, 1], [], []>} : vector<8x16xf32>, vector<16x128xf32>, vector<8x128xf32> -> vector<8x128xf32>
    %cst_3 = arith.constant 2.000000e-01 : f32
    %3 = vector.broadcast %cst_3 : f32 to vector<8x128xf32>
    %4 = arith.mulf %2, %3 : vector<8x128xf32>
    %c0_4 = arith.constant 0 : index
    %c0_5 = arith.constant 0 : index
    %5 = vector.load %arg4[%c0_4, %c0_5] : memref<8x128xf32, #tpu.memory_space<vmem>>, vector<8x128xf32>
    tpu.vector_store %arg4[%c0_4, %c0_5], %4 {strides = array<i32>} : memref<8x128xf32, #tpu.memory_space<vmem>>, vector<8x128xf32>,
    return
  }
  func.func @transform_0(%arg0: i32, %arg1: i32) -> (i32, i32) {
    %c0_i32 = arith.constant 0 : i32
    %c0_i32_0 = arith.constant 0 : i32
    return %arg1, %c0_i32 : i32, i32
  }
  func.func @transform_1(%arg0: i32, %arg1: i32) -> (i32, i32) {
    %c0_i32 = arith.constant 0 : i32
    %c0_i32_0 = arith.constant 0 : i32
    return %c0_i32, %arg0 : i32, i32
  }
  func.func @transform_2(%arg0: i32, %arg1: i32) -> (i32, i32) {
    %c0_i32 = arith.constant 0 : i32
    return %arg1, %arg0 : i32, i32
  }
}

</mosaic_0001>

<llo_original>
// kernel: tpu_custom_call.1
$region0: #{tpu_custom_call.1}
  #allocation0 [shape = 'u32[]', space=smem, size = 0x4, offset = 0x4, fixed_abs, tag = 'smem constant byte address 0x4 - core index']
  #allocation1 [shape = 'u32[144,128]{1,0:T(1,128)}', space=vmem, size = 0x12000, scoped, tag = 'internal scratch']
  %s0 = inlined_call_operand.hbm [shape: f32[16,16], index: 0, kind: input, shape index: {}]
  %s1 = inlined_call_operand.hbm [shape: f32[16,128], index: 1, kind: input, shape index: {}]
  %s2 = inlined_call_operand.hbm [shape: f32[16,128], index: 2, kind: output, shape index: {}]
  %s3 = sld [smem:[#allocation0]]
  $region49: #{tpu_custom_call.1} parent=0
    _
  %s5 = ssub.s32 1, %s3
  %s6 = scalar_select 0, %s5, %s3
  $region1: #{tpu_custom_call.1} parent=0
    #allocation2 [shape = 'u8[8192]{0}', space=vmem, size = 0x2000, scoped, tag = 'input window, operand 0']
    #allocation3 [shape = 's32[2]{0}', space=sflag, size = 0x8, scoped, tag = 'scoped memory for tpu_custom_call.1']
    #allocation4 [shape = 's32[2]{0}', space=sflag, size = 0x8, scoped, tag = 'scoped memory for tpu_custom_call.1']
    #allocation5 [shape = 'u8[8192]{0}', space=vmem, size = 0x2000, scoped, tag = 'input window, operand 1, single buffered']
    #allocation6 [shape = 's32[1]{0}', space=sflag, size = 0x4, scoped, tag = 'scoped memory for tpu_custom_call.1']
    #allocation7 [shape = 'u8[8192]{0}', space=vmem, size = 0x2000, scoped, tag = 'output window, operand 0']
    %7 = vsyncpa [#allocation3], 0
    %s8 = scalar_lea.sflag [#allocation3], 1
    %9 = vsyncpa %s8, 0
    %10 = vsyncpa [#allocation6], 0
    %11 = vsyncpa [#allocation4], 0
    %s12 = scalar_lea.sflag [#allocation4], 1
    %13 = vsyncpa %s12, 0
    loop: start=0, step=1, limit=4
    $region2: #{tpu_custom_call.1} parent=1 // loop_pre_header
      _
    $region3: #{tpu_custom_call.1} parent=1 // loop_header
      %s15 = sphi 0, %s19
      %p16 = scmp.ge.s32.totalorder %s15, 4
      %s22 = sphi 0, %s34
      %s23 = sphi 0, %s30
      %s24 = sphi 0, %s22
      %s25 = sphi 0, %s23
      %s26 = sphi 0, %s24
      %s27 = sphi 0, %s25
      %s37 = sphi 0, %s39
      %s40 = sphi 0, %s37
      %s41 = sphi 0, %s40
      %s57 = sphi 0, %s41
      %s63 = sphi 0, %s65
      %s66 = sphi 0, %s63
      %s67 = sphi 0, %s66
      %s83 = sphi 0, %s67
      %s91 = sphi 0, %s93
      %s94 = sphi 0, %s91
      %s95 = sphi 0, %s94
      %s111 = sphi 0, %s95
    $region4: #{tpu_custom_call.1} parent=1 // loop_header_branch
      %18 = sbr.rel (%p16) target = $region8
    $region5: #{tpu_custom_call.1} parent=1 // loop_body
      %s20 = ssub.s32 %s15, 1
      %s21 = ssub.s32 %s15, 2
      %s28 = sadd.s32 1, %s23
      %p29 = scmp.ge.s32.totalorder %s28, 2
      %s30 = scalar_select %p29, 0, %s28
      %s31 = sadd.s32 1, %s22
      %s32 = scalar_select %p29, %s31, %s22
      %p33 = scmp.ge.s32.totalorder %s32, 1
      %s34 = scalar_select %p33, 0, %s32
      %s35 = ssub.s32 %s23, %s30
      %p36 = scmp.eq.s32.totalorder %s35, 0
      %s38 = sadd.s32 %s37, 1
      %s39 = scalar_select %p36, %s37, %s38
      %p42 = pneg %p36
      %p43 = scmp.eq.s32.totalorder %s15, 1
      %p44 = por %p42, %p43
      %p45 = scmp.ne.s32.totalorder %s37, %s40
      %p46 = scmp.eq.s32.totalorder %s15, 0
      %p47 = por %p45, %p46
      %p48 = scmp.ne.s32.totalorder %s37, %s40
      %p49 = scmp.eq.s32.totalorder %s20, 1
      %p50 = por %p48, %p49
      %p51 = scmp.ne.s32.totalorder %s40, %s41
      %p52 = scmp.eq.s32.totalorder %s20, 0
      %p53 = por %p51, %p52
      %p54 = scmp.ne.s32.totalorder %s40, %s41
      %p55 = scmp.eq.s32.totalorder %s21, 1
      %p56 = por %p54, %p55
      %p58 = scmp.ne.s32.totalorder %s41, %s57
      %p59 = scmp.eq.s32.totalorder %s21, 0
      %p60 = por %p58, %p59
      %s61 = ssub.s32 %s22, %s34
      %p62 = scmp.eq.s32.totalorder %s61, 0
      %s64 = sadd.s32 %s63, 1
      %s65 = scalar_select %p62, %s63, %s64
      %p68 = pneg %p62
      %p69 = scmp.eq.s32.totalorder %s15, 1
      %p70 = por %p68, %p69
      %p71 = scmp.ne.s32.totalorder %s63, %s66
      %p72 = scmp.eq.s32.totalorder %s15, 0
      %p73 = por %p71, %p72
      %p74 = scmp.ne.s32.totalorder %s63, %s66
      %p75 = scmp.eq.s32.totalorder %s20, 1
      %p76 = por %p74, %p75
      %p77 = scmp.ne.s32.totalorder %s66, %s67
      %p78 = scmp.eq.s32.totalorder %s20, 0
      %p79 = por %p77, %p78
      %p80 = scmp.ne.s32.totalorder %s66, %s67
      %p81 = scmp.eq.s32.totalorder %s21, 1
      %p82 = por %p80, %p81
      %p84 = scmp.ne.s32.totalorder %s67, %s83
      %p85 = scmp.eq.s32.totalorder %s21, 0
      %p86 = por %p84, %p85
      %s87 = ssub.s32 %s23, %s30
      %s88 = ssub.s32 %s22, %s34
      %s89 = sor.u32 %s87, %s88
      %p90 = scmp.eq.s32.totalorder %s89, 0
      %s92 = sadd.s32 %s91, 1
      %s93 = scalar_select %p90, %s91, %s92
      %p96 = pneg %p90
      %p97 = scmp.eq.s32.totalorder %s15, 1
      %p98 = por %p96, %p97
      %p99 = scmp.ne.s32.totalorder %s91, %s94
      %p100 = scmp.eq.s32.totalorder %s15, 0
      %p101 = por %p99, %p100
      %p102 = scmp.ne.s32.totalorder %s91, %s94
      %p103 = scmp.eq.s32.totalorder %s20, 1
      %p104 = por %p102, %p103
      %p105 = scmp.ne.s32.totalorder %s94, %s95
      %p106 = scmp.eq.s32.totalorder %s20, 0
      %p107 = por %p105, %p106
      %p108 = scmp.ne.s32.totalorder %s94, %s95
      %p109 = scmp.eq.s32.totalorder %s21, 1
      %p110 = por %p108, %p109
      %p112 = scmp.ne.s32.totalorder %s95, %s111
      %p113 = scmp.eq.s32.totalorder %s21, 0
      %p114 = por %p112, %p113
      %p115 = scmp.le.s32.totalorder 1, %s15
      %p116 = scmp.lt.s32.totalorder %s15, 3
      %p117 = pnand %p115, %p116
      %p118 = pneg %p117
      // Predicated region
      $region9: #{tpu_custom_call.1} parent=5 // pred_check
        _
      $region10: #{tpu_custom_call.1} parent=5 // pred_check_branch
        %120 = sbr.rel (%p117) target = $region12
      $region11: #{tpu_custom_call.1} parent=5 // pred_region
        %s121 = ssub.s32 %s15, 1
        // Predicated region
        $region13: #{tpu_custom_call.1} parent=11 // pred_check
          %p122 = pneg %p79
        $region14: #{tpu_custom_call.1} parent=11 // pred_check_branch
          %124 = sbr.rel (%p122) target = $region16
        $region15: #{tpu_custom_call.1} parent=11 // pred_region
          %s126 = ssub.s32 256, 256
          %127 = vsyncadd [#allocation6], %s126
          %s128 = smul.addr %s24, 128
          %s129 = scalar_lea.hbm %s1, %s128
          %s130 = sshll.u32 [#allocation5], 4
          %s131 = int_to_ptr.vmem [resolvable:$true] %s130
          %136 = dma.hbm_to_vmem [thread:$0]  %s129, 256, %s131, [#allocation6], 128, 128, 8
        $region16: #{tpu_custom_call.1} parent=11 // pred_fallthru
          _
      $region12: #{tpu_custom_call.1} parent=5 // pred_fallthru
        _
      %p137 = scmp.lt.s32.totalorder %s15, 2
      // Predicated region
      $region17: #{tpu_custom_call.1} parent=5 // pred_check
        %p138 = pneg %p137
      $region18: #{tpu_custom_call.1} parent=5 // pred_check_branch
        %140 = sbr.rel (%p138) target = $region20
      $region19: #{tpu_custom_call.1} parent=5 // pred_region
        // Predicated region
        $region21: #{tpu_custom_call.1} parent=19 // pred_check
          %p141 = pneg %p47
        $region22: #{tpu_custom_call.1} parent=19 // pred_check_branch
          %143 = sbr.rel (%p141) target = $region24
        $region23: #{tpu_custom_call.1} parent=19 // pred_region
          %s144 = sand.u32 %s37, 1
          %s145 = scalar_lea.sflag [#allocation3], %s144
          %s146 = sand.u32 %s37, 1
          %s147 = smul.addr %s146, 8
          %s148 = scalar_lea.vmem [#allocation2], %s147
          %s150 = ssub.s32 128, 128
          %151 = vsyncadd %s145, %s150
          %s152 = smul.addr %s23, 128
          %s153 = scalar_lea.hbm %s0, %s152
          %s155 = sshll.u32 %s148, 4
          %s156 = int_to_ptr.vmem [resolvable:$true] %s155
          %158 = dma.hbm_to_vmem [thread:$0]  %s153, 128, %s156, %s145
        $region24: #{tpu_custom_call.1} parent=19 // pred_fallthru
          _
      $region20: #{tpu_custom_call.1} parent=5 // pred_fallthru
        _
      %p159 = scmp.le.s32.totalorder 1, %s15
      %p160 = scmp.lt.s32.totalorder %s15, 3
      %p161 = pnand %p159, %p160
      %p162 = pneg %p161
      // Predicated region
      $region25: #{tpu_custom_call.1} parent=5 // pred_check
        _
      $region26: #{tpu_custom_call.1} parent=5 // pred_check_branch
        %164 = sbr.rel (%p161) target = $region28
      $region27: #{tpu_custom_call.1} parent=5 // pred_region
        %s165 = ssub.s32 %s15, 1
        %s166 = sand.u32 %s40, 1
        %s167 = scalar_lea.sflag [#allocation3], %s166
        %s168 = sand.u32 %s40, 1
        %s169 = smul.addr %s168, 8
        %s170 = scalar_lea.vmem [#allocation2], %s169
        // Predicated region
        $region29: #{tpu_custom_call.1} parent=27 // pred_check
          %p171 = pneg %p53
        $region30: #{tpu_custom_call.1} parent=27 // pred_check_branch
          %173 = sbr.rel (%p171) target = $region32
        $region31: #{tpu_custom_call.1} parent=27 // pred_region
          %174 = dma.done %s167, 128
        $region32: #{tpu_custom_call.1} parent=27 // pred_fallthru
          _
        // Predicated region
        $region33: #{tpu_custom_call.1} parent=27 // pred_check
          %p175 = pneg %p79
        $region34: #{tpu_custom_call.1} parent=27 // pred_check_branch
          %177 = sbr.rel (%p175) target = $region36
        $region35: #{tpu_custom_call.1} parent=27 // pred_region
          %178 = dma.done [#allocation6], 256
        $region36: #{tpu_custom_call.1} parent=27 // pred_fallthru
          _
        %s179 = sand.u32 %s40, 1
        %s180 = scalar_lea.sflag [#allocation3], %s179
        %s181 = sand.u32 %s40, 1
        %s182 = smul.addr %s181, 8
        %s183 = scalar_lea.vmem [#allocation2], %s182
        %p184 = pneg %p53
        %p185 = pneg %p50
        %p186 = pneg %p79
        %p187 = pneg %p76
        %p188 = pneg %p107
        %p189 = pneg %p104
        %s190 = sand.u32 %s94, 1
        %s191 = scalar_lea.sflag [#allocation4], %s190
        %s192 = sand.u32 %s94, 1
        %s193 = smul.addr %s192, 8
        %s194 = scalar_lea.vmem [#allocation7], %s193
        %v195 = vld [vmem:[%s170] sm:$0xff]
        %v196 = vld [vmem:[#allocation5] sm:$0xff]
        %v197 = vld [vmem:[#allocation5 + $0x8] sm:$0xff]
        %vm198 = vcmask 130048
        %v200 = vsel %vm198, %v195, 0
        %202 = vmatprep.subr.mxu0 0.0
        %203 = vmatpush1.msra.mxu0 0.0
        %204 = vmatprep.subr.mxu0 0.0
        %205 = vmatpush1.msra.mxu0 0.0
        %206 = vmatprep.subr.mxu0 0.0
        %207 = vmatpush1.msra.mxu0 0.0
        %208 = vmatprep.subr.mxu0 0.0
        %209 = vmatpush1.msra.mxu0 0.0
        %210 = vmatprep.subr.mxu0 0.0
        %211 = vmatpush1.msra.mxu0 0.0
        %212 = vmatprep.subr.mxu0 0.0
        %213 = vmatpush1.msra.mxu0 0.0
        %214 = vmatprep.subr.mxu0 0.0
        %215 = vmatpush1.msra.mxu0 0.0
        %216 = vmatprep.subr.mxu0 0.0
        %217 = vmatpush1.msra.mxu0 0.0
        %218 = vmatprep.subr.mxu0 0.0
        %219 = vmatpush1.msra.mxu0 0.0
        %220 = vmatprep.subr.mxu0 0.0
        %221 = vmatpush1.msra.mxu0 0.0
        %222 = vmatprep.subr.mxu0 0.0
        %223 = vmatpush1.msra.mxu0 0.0
        %224 = vmatprep.subr.mxu0 0.0
        %225 = vmatpush1.msra.mxu0 0.0
        %226 = vmatprep.subr.mxu0 0.0
        %227 = vmatpush1.msra.mxu0 0.0
        %228 = vmatprep.subr.mxu0 0.0
        %229 = vmatpush1.msra.mxu0 0.0
        %230 = vmatprep.subr.mxu0 0.0
        %231 = vmatpush1.msra.mxu0 %v197
        %232 = vmatprep.subr.mxu0 0.0
        %233 = vmatpush1.msra.mxu0 %v196
        %234 = vmatprep.subr.mxu0 0.0
        %235 = vmatpush2.msra.mxu0 0.0
        %236 = vmatprep.subr.mxu0 0.0
        %237 = vmatpush2.msra.mxu0 0.0
        %238 = vmatprep.subr.mxu0 0.0
        %239 = vmatpush2.msra.mxu0 0.0
        %240 = vmatprep.subr.mxu0 0.0
        %241 = vmatpush2.msra.mxu0 0.0
        %242 = vmatprep.subr.mxu0 0.0
        %243 = vmatpush2.msra.mxu0 0.0
        %244 = vmatprep.subr.mxu0 0.0
        %245 = vmatpush2.msra.mxu0 0.0
        %246 = vmatprep.subr.mxu0 0.0
        %247 = vmatpush2.msra.mxu0 0.0
        %248 = vmatprep.subr.mxu0 0.0
        %249 = vmatpush2.msra.mxu0 0.0
        %250 = vmatprep.subr.mxu0 0.0
        %251 = vmatpush2.msra.mxu0 0.0
        %252 = vmatprep.subr.mxu0 0.0
        %253 = vmatpush2.msra.mxu0 0.0
        %254 = vmatprep.subr.mxu0 0.0
        %255 = vmatpush2.msra.mxu0 0.0
        %256 = vmatprep.subr.mxu0 0.0
        %257 = vmatpush2.msra.mxu0 0.0
        %258 = vmatprep.subr.mxu0 0.0
        %259 = vmatpush2.msra.mxu0 0.0
        %260 = vmatprep.subr.mxu0 0.0
        %261 = vmatpush2.msra.mxu0 0.0
        %262 = vmatprep.subr.mxu0 0.0
        %263 = vmatpush2.msra.mxu0 0.0
        %264 = vmatprep.subr.mxu0 0.0
        %265 = vmatpush2.msra.mxu0 0.0
        %266 = vmatprep.mubr.f32.mxu0 0.0
        %267 = vmatmul.mubr.f32.gmra.mxu0 %v200
        %v268 = vpop.f32.mrf.mxu0
        %v269 = vadd.f32 0.0, %v268
        %v270 = vpop.f32.mrf.mxu0
        %271 = vdwg.mxu0
        %v272 = vmul.f32 %v269, 0.2
        %273 = vst [vmem:[%s194] sm:$0xff] %v272
        %s274 = sand.u32 %s94, 1
        %s275 = scalar_lea.sflag [#allocation4], %s274
        %s276 = sand.u32 %s94, 1
        %s277 = smul.addr %s276, 8
        %s278 = scalar_lea.vmem [#allocation7], %s277
        // Predicated region
        $region37: #{tpu_custom_call.1} parent=27 // pred_check
          %p279 = pneg %p104
        $region38: #{tpu_custom_call.1} parent=27 // pred_check_branch
          %281 = sbr.rel (%p279) target = $region40
        $region39: #{tpu_custom_call.1} parent=27 // pred_region
          %s283 = ssub.s32 128, 128
          %284 = vsyncadd %s275, %s283
          %s285 = sadd.s32 %s24, %s25
          %s286 = smul.addr %s285, 128
          %s287 = scalar_lea.hbm %s2, %s286
          %s289 = sshll.u32 %s278, 4
          %s290 = int_to_ptr.vmem [resolvable:$true] %s289
          %292 = dma.vmem_to_hbm [thread:$0]  %s290, 128, %s287, %s275
        $region40: #{tpu_custom_call.1} parent=27 // pred_fallthru
          _
      $region28: #{tpu_custom_call.1} parent=5 // pred_fallthru
        _
      %p293 = scmp.le.s32.totalorder 2, %s15
      // Predicated region
      $region41: #{tpu_custom_call.1} parent=5 // pred_check
        %p294 = pneg %p293
      $region42: #{tpu_custom_call.1} parent=5 // pred_check_branch
        %296 = sbr.rel (%p294) target = $region44
      $region43: #{tpu_custom_call.1} parent=5 // pred_region
        %s297 = ssub.s32 %s15, 2
        // Predicated region
        $region45: #{tpu_custom_call.1} parent=43 // pred_check
          %p298 = pneg %p110
        $region46: #{tpu_custom_call.1} parent=43 // pred_check_branch
          %300 = sbr.rel (%p298) target = $region48
        $region47: #{tpu_custom_call.1} parent=43 // pred_region
          %s301 = sand.u32 %s95, 1
          %s302 = scalar_lea.sflag [#allocation4], %s301
          %s303 = sand.u32 %s95, 1
          %s304 = smul.addr %s303, 8
          %s305 = scalar_lea.vmem [#allocation7], %s304
          %306 = dma.done %s302, 128
        $region48: #{tpu_custom_call.1} parent=43 // pred_fallthru
          _
      $region44: #{tpu_custom_call.1} parent=5 // pred_fallthru
        _
    $region6: #{tpu_custom_call.1} parent=1 // loop_footer
      %s19 = sadd.s32 1, %s15
    $region7: #{tpu_custom_call.1} parent=1 // loop_footer_branch
      %14 = sbr.rel target = $region3
    $region8: #{tpu_custom_call.1} parent=1 // loop_exit
      _
    %307 = vsyncpa [#allocation3], 1
    %s308 = scalar_lea.sflag [#allocation3], 1
    %309 = vsyncpa %s308, 1
    %310 = vsyncpa [#allocation6], 1
    %311 = vsyncpa [#allocation4], 1
    %s312 = scalar_lea.sflag [#allocation4], 1
    %313 = vsyncpa %s312, 1

</llo_original>
